<compile_context>
chip_gen: v7x
topology: tpu7x:2x2x1
jax: 0.10.0
libtpu: 0.0.40
codegen_flags: <defaults>
</compile_context>

<pallas_src>
import math
from functools import partial

import jax
import jax.numpy as jnp
from jax.experimental import pallas as pl
from jax.experimental.pallas import tpu as pltpu

INPUT_DIM = 32
HIDDEN_DIM = 150
OUTPUT_DIM = 4

_SUBLANE = 16  # keep batch tiles a multiple of 16 (bf16 sublane packing)


def _round_up(n: int, m: int) -> int:
    return ((n + m - 1) // m) * m


def _bf16_transcendentals_ok() -> bool:
    """v6e / v7x have a bf16 EUP path for tanh/sigmoid; v5e and older do not."""
    try:
        kind = jax.devices()[0].device_kind.lower()
    except Exception:
        return False
    return any(tag in kind for tag in ("v6", "v7", "7x"))


def _mlp_kernel(x_ref, w1_ref, b1_ref, w2_ref, b2_ref, w3_ref, b3_ref, o_ref,
                *, bf16_act: bool):
    # Entire hot path (3 MXU matmuls + tanh/tanh/sigmoid) in one kernel body.
    act_dt = jnp.bfloat16 if bf16_act else jnp.float32
    x = x_ref[...].astype(jnp.bfloat16)                                  # in-kernel cast
    h1 = jnp.dot(x, w1_ref[...], preferred_element_type=jnp.float32) + b1_ref[...]
    h1 = jnp.tanh(h1.astype(act_dt)).astype(jnp.bfloat16)                # [tile, 256]
    h2 = jnp.dot(h1, w2_ref[...], preferred_element_type=jnp.float32) + b2_ref[...]
    h2 = jnp.tanh(h2.astype(act_dt)).astype(jnp.bfloat16)                # [tile, 256]
    logits = jnp.dot(h2, w3_ref[...], preferred_element_type=jnp.float32) + b3_ref[...]
    # Store only the real output columns (lane-masked store; ~32x less HBM).
    o_ref[...] = jax.nn.sigmoid(logits[:, : o_ref.shape[1]])             # f32 [tile, out_dim]


def prepare_params(params):
    """One-time pad+cast of the weights (hoisted out of the forward path).

    Zero-padding is exact for this network: tanh(0)=0 and the padded rows of
    the next weight matrix are zero, so padded lanes never leak into the
    real outputs.
    """
    w1, b1, w2, b2, w3, b3 = params
    in_dim, hid = w1.shape
    out_dim = w3.shape[1]
    hid_p = _round_up(hid, 128)      # 150 -> 256
    out_p = _round_up(out_dim, 128)  # MXU-friendly w3/b3; kernel slices to out_dim

    def pad2(a, rows, cols):
        return jnp.pad(a, ((0, rows - a.shape[0]), (0, cols - a.shape[1])))

    w1p = pad2(w1, in_dim, hid_p).astype(jnp.bfloat16)
    b1p = pad2(b1, 1, hid_p)                      # biases stay f32
    w2p = pad2(w2, hid_p, hid_p).astype(jnp.bfloat16)
    b2p = pad2(b2, 1, hid_p)
    w3p = pad2(w3, hid_p, out_p).astype(jnp.bfloat16)
    b3p = pad2(b3, 1, out_p)
    return (w1p, b1p, w2p, b2p, w3p, b3p, out_dim)


def _choose_tiling(B: int, batch_tile: int):
    """Pick (tile, num_steps) with minimal pad waste and >=2 steps when large."""
    b16 = _round_up(max(B, 1), _SUBLANE)
    if b16 <= batch_tile:
        return b16, 1
    num_steps = math.ceil(B / batch_tile)
    tile = _round_up(math.ceil(B / num_steps), _SUBLANE)
    return tile, num_steps


def rasmus_forward(x, prepared, *, batch_tile=512, bf16_act=None):
    """x: [B, input_dim] f32.  prepared: output of prepare_params.
    Returns sigmoid(MLP(x)): [B, output_dim] f32."""
    w1p, b1p, w2p, b2p, w3p, b3p, out_dim = prepared
    B, in_dim = x.shape
    hid_p = w1p.shape[1]
    out_p = w3p.shape[1]
    if bf16_act is None:
        bf16_act = _bf16_transcendentals_ok()

    tile, num_steps = _choose_tiling(B, batch_tile)
    B_pad = tile * num_steps
    xp = x if B_pad == B else jnp.pad(x, ((0, B_pad - B), (0, 0)))

    def rep(shape):
        # Weights/biases are tiny; constant index_map keeps them resident.
        return pl.BlockSpec(shape, lambda i: (0, 0))

    cost = pl.CostEstimate(
        flops=2 * B_pad * (in_dim * hid_p + hid_p * hid_p + hid_p * out_p),
        transcendentals=B_pad * (2 * hid_p + out_dim),
        bytes_accessed=(
            B_pad * in_dim * 4                     # x read
            + (in_dim * hid_p + hid_p * hid_p + hid_p * out_p) * 2  # bf16 weights
            + (2 * hid_p + out_p) * 4              # biases
            + B_pad * out_dim * 4                  # output write
        ),
    )

    out = pl.pallas_call(
        partial(_mlp_kernel, bf16_act=bf16_act),
        out_shape=jax.ShapeDtypeStruct((B_pad, out_dim), jnp.float32),
        grid_spec=pltpu.PrefetchScalarGridSpec(
            num_scalar_prefetch=0,
            grid=(num_steps,),
            in_specs=[
                pl.BlockSpec((tile, in_dim), lambda i: (i, 0)),  # x tile (f32)
                rep((in_dim, hid_p)),   # w1
                rep((1, hid_p)),        # b1
                rep((hid_p, hid_p)),    # w2
                rep((1, hid_p)),        # b2
                rep((hid_p, out_p)),    # w3
                rep((1, out_p)),        # b3
            ],
            out_specs=pl.BlockSpec((tile, out_dim), lambda i: (i, 0)),
        ),
        compiler_params=pltpu.CompilerParams(
            dimension_semantics=("parallel",)
        ),
        cost_estimate=cost,
    )(xp, w1p, b1p, w2p, b2p, w3p, b3p)

    return out if B_pad == B else out[:B]


def init_params(key, input_dim, hidden_dim, output_dim):
    """Deterministic synthetic parameters (PyTorch-Linear-like uniform init)."""
    keys = jax.random.split(key, 6)

    def linear(kw, kb, fan_in, fan_out):
        bound = 1.0 / jnp.sqrt(fan_in)
        w = jax.random.uniform(kw, (fan_in, fan_out), jnp.float32, -bound, bound)
        b = jax.random.uniform(kb, (1, fan_out), jnp.float32, -bound, bound)
        return w, b

    w1, b1 = linear(keys[0], keys[1], input_dim, hidden_dim)
    w2, b2 = linear(keys[2], keys[3], hidden_dim, hidden_dim)
    w3, b3 = linear(keys[4], keys[5], hidden_dim, output_dim)
    return (w1, b1, w2, b2, w3, b3)


def reference_forward(x, params):
    w1, b1, w2, b2, w3, b3 = params
    h1 = jnp.tanh(x @ w1 + b1)
    h2 = jnp.tanh(h1 @ w2 + b2)
    return jax.nn.sigmoid(h2 @ w3 + b3)


if __name__ == "__main__":
    key = jax.random.PRNGKey(0)
    k_x, k_p = jax.random.split(key)

    batch = 16
    x = jax.random.normal(k_x, (batch, INPUT_DIM), dtype=jnp.float32)
    params = init_params(k_p, INPUT_DIM, HIDDEN_DIM, OUTPUT_DIM)
    prepared = prepare_params(params)   # one-time weight pad/cast

    out = rasmus_forward(x, prepared)
    out = jax.block_until_ready(out)

    ref = reference_forward(x, params)
    assert out.shape == (batch, OUTPUT_DIM)
    # bf16 MXU inputs (and bf16 tanh on v6e/v7x) -> loosened tolerance.
    assert jnp.allclose(out, ref, atol=2e-2, rtol=2e-2), "mismatch vs JAX reference"

    # Also exercise a multi-step grid (batch padding + tiling path).
    batch2 = 1100
    x2 = jax.random.normal(k_x, (batch2, INPUT_DIM), dtype=jnp.float32)
    out2 = jax.block_until_ready(rasmus_forward(x2, prepared))
    ref2 = reference_forward(x2, params)
    assert out2.shape == (batch2, OUTPUT_DIM)
    assert jnp.allclose(out2, ref2, atol=2e-2, rtol=2e-2), "mismatch (tiled path)"

    print("KERNEL_OK")
</pallas_src>

<mosaic_0001>
module attributes {stable_mosaic.version = 11 : i64} {
  func.func @_mlp_kernel(%arg0: i32, %arg1: memref<16x32xf32, #tpu.memory_space<vmem>>, %arg2: memref<32x256xbf16, #tpu.memory_space<vmem>>, %arg3: memref<1x256xf32, #tpu.memory_space<vmem>>, %arg4: memref<256x256xbf16, #tpu.memory_space<vmem>>, %arg5: memref<1x256xf32, #tpu.memory_space<vmem>>, %arg6: memref<256x128xbf16, #tpu.memory_space<vmem>>, %arg7: memref<1x128xf32, #tpu.memory_space<vmem>>, %arg8: memref<16x4xf32, #tpu.memory_space<vmem>>) attributes {dimension_semantics = [#tpu.dimension_semantics<parallel>], iteration_bounds = array<i64: 1>, scalar_prefetch = 0 : i64, scratch_operands = 0 : i64, tpu.core_type = #tpu.core_type<tc>, window_params = [{transform_indices = @transform_0, window_bounds = array<i64: 16, 32>}, {pipeline_mode = #tpu.pipeline_mode<synchronous>, transform_indices = @transform_1, window_bounds = array<i64: 32, 256>}, {pipeline_mode = #tpu.pipeline_mode<synchronous>, transform_indices = @transform_2, window_bounds = array<i64: 1, 256>}, {pipeline_mode = #tpu.pipeline_mode<synchronous>, transform_indices = @transform_3, window_bounds = array<i64: 256, 256>}, {pipeline_mode = #tpu.pipeline_mode<synchronous>, transform_indices = @transform_4, window_bounds = array<i64: 1, 256>}, {pipeline_mode = #tpu.pipeline_mode<synchronous>, transform_indices = @transform_5, window_bounds = array<i64: 256, 128>}, {pipeline_mode = #tpu.pipeline_mode<synchronous>, transform_indices = @transform_6, window_bounds = array<i64: 1, 128>}, {transform_indices = @transform_7, window_bounds = array<i64: 16, 4>}]} {
    %c0 = arith.constant 0 : index
    %c0_0 = arith.constant 0 : index
    %0 = vector.load %arg1[%c0, %c0_0] : memref<16x32xf32, #tpu.memory_space<vmem>>, vector<16x32xf32>
    %1 = arith.truncf %0 : vector<16x32xf32> to vector<16x32xbf16>
    %c0_1 = arith.constant 0 : index
    %c0_2 = arith.constant 0 : index
    %2 = vector.load %arg2[%c0_1, %c0_2] : memref<32x256xbf16, #tpu.memory_space<vmem>>, vector<32x256xbf16>
    %cst = arith.constant dense<0.000000e+00> : vector<16x256xf32>
    %3 = tpu.matmul %1, %2, %cst {dimension_numbers = #tpu.dot_dimension_numbers<[1], [0], [0], [1], [0, 0, 1, 1], [], []>} : vector<16x32xbf16>, vector<32x256xbf16>, vector<16x256xf32> -> vector<16x256xf32>
    %c0_3 = arith.constant 0 : index
    %c0_4 = arith.constant 0 : index
    %4 = vector.load %arg3[%c0_3, %c0_4] : memref<1x256xf32, #tpu.memory_space<vmem>>, vector<1x256xf32>
    %5 = vector.broadcast %4 : vector<1x256xf32> to vector<16x256xf32>
    %6 = arith.addf %3, %5 : vector<16x256xf32>
    %7 = math.tanh %6 : vector<16x256xf32>
    %8 = arith.truncf %7 : vector<16x256xf32> to vector<16x256xbf16>
    %c0_5 = arith.constant 0 : index
    %c0_6 = arith.constant 0 : index
    %9 = vector.load %arg4[%c0_5, %c0_6] : memref<256x256xbf16, #tpu.memory_space<vmem>>, vector<256x256xbf16>
    %cst_7 = arith.constant dense<0.000000e+00> : vector<16x256xf32>
    %10 = tpu.matmul %8, %9, %cst_7 {dimension_numbers = #tpu.dot_dimension_numbers<[1], [0], [0], [1], [0, 0, 1, 1], [], []>} : vector<16x256xbf16>, vector<256x256xbf16>, vector<16x256xf32> -> vector<16x256xf32>
    %c0_8 = arith.constant 0 : index
    %c0_9 = arith.constant 0 : index
    %11 = vector.load %arg5[%c0_8, %c0_9] : memref<1x256xf32, #tpu.memory_space<vmem>>, vector<1x256xf32>
    %12 = vector.broadcast %11 : vector<1x256xf32> to vector<16x256xf32>
    %13 = arith.addf %10, %12 : vector<16x256xf32>
    %14 = math.tanh %13 : vector<16x256xf32>
    %15 = arith.truncf %14 : vector<16x256xf32> to vector<16x256xbf16>
    %c0_10 = arith.constant 0 : index
    %c0_11 = arith.constant 0 : index
    %16 = vector.load %arg6[%c0_10, %c0_11] : memref<256x128xbf16, #tpu.memory_space<vmem>>, vector<256x128xbf16>
    %cst_12 = arith.constant dense<0.000000e+00> : vector<16x128xf32>
    %17 = tpu.matmul %15, %16, %cst_12 {dimension_numbers = #tpu.dot_dimension_numbers<[1], [0], [0], [1], [0, 0, 1, 1], [], []>} : vector<16x256xbf16>, vector<256x128xbf16>, vector<16x128xf32> -> vector<16x128xf32>
    %c0_13 = arith.constant 0 : index
    %c0_14 = arith.constant 0 : index
    %18 = vector.load %arg7[%c0_13, %c0_14] : memref<1x128xf32, #tpu.memory_space<vmem>>, vector<1x128xf32>
    %19 = vector.broadcast %18 : vector<1x128xf32> to vector<16x128xf32>
    %20 = arith.addf %17, %19 : vector<16x128xf32>
    %21 = vector.extract_strided_slice %20 {offsets = [0, 0], sizes = [16, 4], strides = [1, 1]} : vector<16x128xf32> to vector<16x4xf32>
    %22 = arith.negf %21 : vector<16x4xf32>
    %23 = math.exp %22 : vector<16x4xf32>
    %cst_15 = arith.constant 1.000000e+00 : f32
    %24 = vector.broadcast %cst_15 : f32 to vector<16x4xf32>
    %25 = arith.addf %24, %23 : vector<16x4xf32>
    %26 = arith.divf %24, %25 : vector<16x4xf32>
    %c0_16 = arith.constant 0 : index
    %c0_17 = arith.constant 0 : index
    %27 = vector.load %arg8[%c0_16, %c0_17] : memref<16x4xf32, #tpu.memory_space<vmem>>, vector<16x4xf32>
    tpu.vector_store %arg8[%c0_16, %c0_17], %26 {strides = array<i32>} : memref<16x4xf32, #tpu.memory_space<vmem>>, vector<16x4xf32>,
    return
  }
  func.func @transform_0(%arg0: i32) -> (i32, i32) {
    %c0_i32 = arith.constant 0 : i32
    %c0_i32_0 = arith.constant 0 : i32
    return %arg0, %c0_i32 : i32, i32
  }
  func.func @transform_1(%arg0: i32) -> (i32, i32) {
    %c0_i32 = arith.constant 0 : i32
    %c0_i32_0 = arith.constant 0 : i32
    %c0_i32_1 = arith.constant 0 : i32
    return %c0_i32, %c0_i32_0 : i32, i32
  }
  func.func @transform_2(%arg0: i32) -> (i32, i32) {
    %c0_i32 = arith.constant 0 : i32
    %c0_i32_0 = arith.constant 0 : i32
    %c0_i32_1 = arith.constant 0 : i32
    return %c0_i32, %c0_i32_0 : i32, i32
  }
  func.func @transform_3(%arg0: i32) -> (i32, i32) {
    %c0_i32 = arith.constant 0 : i32
    %c0_i32_0 = arith.constant 0 : i32
    %c0_i32_1 = arith.constant 0 : i32
    return %c0_i32, %c0_i32_0 : i32, i32
  }
  func.func @transform_4(%arg0: i32) -> (i32, i32) {
    %c0_i32 = arith.constant 0 : i32
    %c0_i32_0 = arith.constant 0 : i32
    %c0_i32_1 = arith.constant 0 : i32
    return %c0_i32, %c0_i32_0 : i32, i32
  }
  func.func @transform_5(%arg0: i32) -> (i32, i32) {
    %c0_i32 = arith.constant 0 : i32
    %c0_i32_0 = arith.constant 0 : i32
    %c0_i32_1 = arith.constant 0 : i32
    return %c0_i32, %c0_i32_0 : i32, i32
  }
  func.func @transform_6(%arg0: i32) -> (i32, i32) {
    %c0_i32 = arith.constant 0 : i32
    %c0_i32_0 = arith.constant 0 : i32
    %c0_i32_1 = arith.constant 0 : i32
    return %c0_i32, %c0_i32_0 : i32, i32
  }
  func.func @transform_7(%arg0: i32) -> (i32, i32) {
    %c0_i32 = arith.constant 0 : i32
    %c0_i32_0 = arith.constant 0 : i32
    return %arg0, %c0_i32 : i32, i32
  }
}

</mosaic_0001>

<llo_original>
// kernel: tpu_custom_call.1
$region0: #{tpu_custom_call.1}
  #allocation0 [shape = 'u32[]', space=smem, size = 0x4, offset = 0x4, fixed_abs, tag = 'smem constant byte address 0x4 - core index']
  #allocation1 [shape = 'u32[144,128]{1,0:T(1,128)}', space=vmem, size = 0x12000, scoped, tag = 'internal scratch']
  %s0 = inlined_call_operand.hbm [shape: f32[16,32], index: 0, kind: input, shape index: {}]
  %s1 = inlined_call_operand.hbm [shape: bf16[32,256], index: 1, kind: input, shape index: {}]
  %s2 = inlined_call_operand.vmem [shape: f32[1,256], index: 2, kind: input, shape index: {}]
  %s3 = inlined_call_operand.hbm [shape: bf16[256,256], index: 3, kind: input, shape index: {}]
  %s4 = inlined_call_operand.vmem [shape: f32[1,256], index: 4, kind: input, shape index: {}]
  %s5 = inlined_call_operand.hbm [shape: bf16[256,128], index: 5, kind: input, shape index: {}]
  %s6 = inlined_call_operand.vmem [shape: f32[1,128], index: 6, kind: input, shape index: {}]
  %s7 = inlined_call_operand.vmem [shape: f32[16,4], index: 7, kind: output, shape index: {}]
  %s8 = sld [smem:[#allocation0]]
  $region54: #{tpu_custom_call.1} parent=0
    _
  %s10 = ssub.s32 1, %s8
  %s11 = scalar_select 0, %s10, %s8
  $region1: #{tpu_custom_call.1} parent=0
    #allocation2 [shape = 'u8[8192]{0}', space=vmem, size = 0x2000, scoped, tag = 'input window, operand 0, single buffered']
    #allocation3 [shape = 's32[1]{0}', space=sflag, size = 0x4, scoped, tag = 'scoped memory for tpu_custom_call.1']
    #allocation4 [shape = 'u8[16384]{0}', space=vmem, size = 0x4000, scoped, tag = 'input window, operand 1, single buffered']
    #allocation5 [shape = 's32[1]{0}', space=sflag, size = 0x4, scoped, tag = 'scoped memory for tpu_custom_call.1']
    #allocation6 [shape = 'u8[131072]{0}', space=vmem, size = 0x20000, scoped, tag = 'input window, operand 3, single buffered']
    #allocation7 [shape = 'u8[65536]{0}', space=vmem, size = 0x10000, scoped, tag = 'input window, operand 5, single buffered']
    #allocation8 [shape = 's32[1]{0}', space=sflag, size = 0x4, scoped, tag = 'scoped memory for tpu_custom_call.1']
    %12 = vsyncpa [#allocation3], 0
    %13 = vsyncpa [#allocation5], 0
    %14 = vsyncpa [#allocation8], 0
    // Predicated region
    $region2: #{tpu_custom_call.1} parent=1 // pred_check
      _
    $region3: #{tpu_custom_call.1} parent=1 // pred_check_branch
      %16 = sbr.rel (0) target = $region5
    $region4: #{tpu_custom_call.1} parent=1 // pred_region
      %s18 = ssub.s32 256, 256
      %19 = vsyncadd [#allocation3], %s18
      %s20 = sshll.u32 [#allocation2], 4
      %s21 = int_to_ptr.vmem [resolvable:$true] %s20
      %26 = dma.hbm_to_vmem [thread:$0]  %s0, 256, %s21, [#allocation3], 128, 128, 8
    $region5: #{tpu_custom_call.1} parent=1 // pred_fallthru
      _
    // Predicated region
    $region6: #{tpu_custom_call.1} parent=1 // pred_check
      _
    $region7: #{tpu_custom_call.1} parent=1 // pred_check_branch
      %28 = sbr.rel (0) target = $region9
    $region8: #{tpu_custom_call.1} parent=1 // pred_region
      %s30 = ssub.s32 512, 512
      %31 = vsyncadd [#allocation5], %s30
      %s32 = sshll.u32 [#allocation4], 4
      %s33 = int_to_ptr.vmem [resolvable:$true] %s32
      %38 = dma.hbm_to_vmem [thread:$0]  %s1, 512, %s33, [#allocation5], 128, 128, 8
    $region9: #{tpu_custom_call.1} parent=1 // pred_fallthru
      _
    // Predicated region
    $region10: #{tpu_custom_call.1} parent=1 // pred_check
      _
    $region11: #{tpu_custom_call.1} parent=1 // pred_check_branch
      %40 = sbr.rel (0) target = $region13
    $region12: #{tpu_custom_call.1} parent=1 // pred_region
      _
    $region13: #{tpu_custom_call.1} parent=1 // pred_fallthru
      _
    // Predicated region
    $region14: #{tpu_custom_call.1} parent=1 // pred_check
      _
    $region15: #{tpu_custom_call.1} parent=1 // pred_check_branch
      %42 = sbr.rel (0) target = $region17
    $region16: #{tpu_custom_call.1} parent=1 // pred_region
      %s44 = ssub.s32 4096, 4096
      %45 = vsyncadd [#allocation5], %s44
      %s46 = sshll.u32 [#allocation6], 4
      %s47 = int_to_ptr.vmem [resolvable:$true] %s46
      %52 = dma.hbm_to_vmem [thread:$0]  %s3, 4096, %s47, [#allocation5], 128, 128, 8
    $region17: #{tpu_custom_call.1} parent=1 // pred_fallthru
      _
    // Predicated region
    $region18: #{tpu_custom_call.1} parent=1 // pred_check
      _
    $region19: #{tpu_custom_call.1} parent=1 // pred_check_branch
      %54 = sbr.rel (0) target = $region21
    $region20: #{tpu_custom_call.1} parent=1 // pred_region
      _
    $region21: #{tpu_custom_call.1} parent=1 // pred_fallthru
      _
    // Predicated region
    $region22: #{tpu_custom_call.1} parent=1 // pred_check
      _
    $region23: #{tpu_custom_call.1} parent=1 // pred_check_branch
      %56 = sbr.rel (0) target = $region25
    $region24: #{tpu_custom_call.1} parent=1 // pred_region
      %s58 = ssub.s32 2048, 2048
      %59 = vsyncadd [#allocation8], %s58
      %s60 = sshll.u32 [#allocation7], 4
      %s61 = int_to_ptr.vmem [resolvable:$true] %s60
      %66 = dma.hbm_to_vmem [thread:$0]  %s5, 2048, %s61, [#allocation8], 64, 64, 4
    $region25: #{tpu_custom_call.1} parent=1 // pred_fallthru
      _
    // Predicated region
    $region26: #{tpu_custom_call.1} parent=1 // pred_check
      _
    $region27: #{tpu_custom_call.1} parent=1 // pred_check_branch
      %68 = sbr.rel (0) target = $region29
    $region28: #{tpu_custom_call.1} parent=1 // pred_region
      _
    $region29: #{tpu_custom_call.1} parent=1 // pred_fallthru
      _
    // Predicated region
    $region30: #{tpu_custom_call.1} parent=1 // pred_check
      _
    $region31: #{tpu_custom_call.1} parent=1 // pred_check_branch
      %70 = sbr.rel (0) target = $region33
    $region32: #{tpu_custom_call.1} parent=1 // pred_region
      %71 = dma.done [#allocation3], 256
    $region33: #{tpu_custom_call.1} parent=1 // pred_fallthru
      _
    // Predicated region
    $region34: #{tpu_custom_call.1} parent=1 // pred_check
      _
    $region35: #{tpu_custom_call.1} parent=1 // pred_check_branch
      %73 = sbr.rel (0) target = $region37
    $region36: #{tpu_custom_call.1} parent=1 // pred_region
      %74 = dma.done [#allocation5], 512
    $region37: #{tpu_custom_call.1} parent=1 // pred_fallthru
      _
    // Predicated region
    $region38: #{tpu_custom_call.1} parent=1 // pred_check
      _
    $region39: #{tpu_custom_call.1} parent=1 // pred_check_branch
      %76 = sbr.rel (0) target = $region41
    $region40: #{tpu_custom_call.1} parent=1 // pred_region
      %77 = dma.done [#allocation5], 4096
    $region41: #{tpu_custom_call.1} parent=1 // pred_fallthru
      _
    // Predicated region
    $region42: #{tpu_custom_call.1} parent=1 // pred_check
      _
    $region43: #{tpu_custom_call.1} parent=1 // pred_check_branch
      %79 = sbr.rel (0) target = $region45
    $region44: #{tpu_custom_call.1} parent=1 // pred_region
      %80 = dma.done [#allocation8], 2048
    $region45: #{tpu_custom_call.1} parent=1 // pred_fallthru
      _
    %v82 = vld [vmem:[#allocation2] sm:$0xff]
    %v83 = vld [vmem:[#allocation2 + $0x8] sm:$0xff]
    %v84 = vpack.c.bf16 %v83, %v82
    %v85 = vld [vmem:[#allocation4] sm:$0xff]
    %v86 = vld [vmem:[#allocation4 + $0x8] sm:$0xff]
    %v87 = vld [vmem:[#allocation4 + $0x10] sm:$0xff]
    %v88 = vld [vmem:[#allocation4 + $0x18] sm:$0xff]
    %v89 = vld [vmem:[%s2] sm:$0x3]
    %v91 = vlaneseq
    %v92 = vshrl.u32 %v91, 7
    %v93 = vsub.s32 0, %v92
    %v94 = vrot.slane %v89, %v93
    %v95 = vlaneseq
    %v96 = vshrl.u32 %v95, 7
    %v97 = vsub.s32 1, %v96
    %v98 = vrot.slane %v89, %v97
    %v105 = vunpack.c.l.b16 %v85
    %v106 = vunpack.c.h.b16 %v85
    %v107 = vunpack.c.l.b16 %v86
    %v108 = vunpack.c.h.b16 %v86
    %v109 = vunpack.c.l.b16 %v87
    %v110 = vunpack.c.h.b16 %v87
    %v111 = vunpack.c.l.b16 %v88
    %v112 = vunpack.c.h.b16 %v88
    %v113 = vpack.c.b16 %v107, %v105
    %v114 = vpack.c.b16 %v108, %v106
    %v115 = vpack.c.b16 %v111, %v109
    %v116 = vpack.c.b16 %v112, %v110
    %vm121 = vcmask 261120
    %v123 = vsel %vm121, %v84, 0
    %125 = vmatprep.subr.bf16.mxu0 %v114
    %126 = vmatpush1.bf16.msra.mxu0 %v113
    %127 = vmatprep.subr.bf16.mxu0 %v116
    %128 = vmatpush1.bf16.msra.mxu0 %v115
    %129 = vmatprep.subr.bf16.mxu0 0
    %130 = vmatpush1.bf16.msra.mxu0 0
    %131 = vmatprep.subr.bf16.mxu0 0
    %132 = vmatpush1.bf16.msra.mxu0 0
    %133 = vmatprep.subr.bf16.mxu0 0
    %134 = vmatpush1.bf16.msra.mxu0 0
    %135 = vmatprep.subr.bf16.mxu0 0
    %136 = vmatpush1.bf16.msra.mxu0 0
    %137 = vmatprep.subr.bf16.mxu0 0
    %138 = vmatpush1.bf16.msra.mxu0 0
    %139 = vmatprep.subr.bf16.mxu0 0
    %140 = vmatpush1.bf16.msra.mxu0 0
    %141 = vmatprep.subr.bf16.mxu0 0
    %142 = vmatpush1.bf16.msra.mxu0 0
    %143 = vmatprep.subr.bf16.mxu0 0
    %144 = vmatpush1.bf16.msra.mxu0 0
    %145 = vmatprep.subr.bf16.mxu0 0
    %146 = vmatpush1.bf16.msra.mxu0 0
    %147 = vmatprep.subr.bf16.mxu0 0
    %148 = vmatpush1.bf16.msra.mxu0 0
    %149 = vmatprep.subr.bf16.mxu0 0
    %150 = vmatpush1.bf16.msra.mxu0 0
    %151 = vmatprep.subr.bf16.mxu0 0
    %152 = vmatpush1.bf16.msra.mxu0 0
    %153 = vmatprep.subr.bf16.mxu0 0
    %154 = vmatpush1.bf16.msra.mxu0 0
    %155 = vmatprep.subr.bf16.mxu0 0
    %156 = vmatpush1.bf16.msra.mxu0 0
    %157 = vmatprep.mubr.bf16.mxu0 0
    %158 = vmatmul.mubr.bf16.gmra.mrb[0].mxu0 %v123
    %v159 = vpop.f32.mrb[0].mxu0
    %v160 = vadd.f32 %v94, %v159
    %v161 = vpop.f32.mrb[0].mxu0
    %v162 = vadd.f32 %v98, %v161
    %v163 = vpop.f32.mrb[0].mxu0
    %v164 = vadd.f32 %v94, %v163
    %v165 = vpop.f32.mrb[0].mxu0
    %v166 = vadd.f32 %v98, %v165
    %167 = vdwg.mxu0
    %v168 = vtanh.pop %v160
    %v169 = vtanh.pop %v162
    %v170 = vtanh.pop %v164
    %v171 = vtanh.pop %v166
    %v172 = vpack.c.bf16 %v170, %v168
    %v173 = vpack.c.bf16 %v171, %v169
    %v174 = vld [vmem:[#allocation6] sm:$0xff]
    %v175 = vld [vmem:[#allocation6 + $0x8] sm:$0xff]
    %v176 = vld [vmem:[#allocation6 + $0x10] sm:$0xff]
    %v177 = vld [vmem:[#allocation6 + $0x18] sm:$0xff]
    %v178 = vld [vmem:[#allocation6 + $0x20] sm:$0xff]
    %v179 = vld [vmem:[#allocation6 + $0x28] sm:$0xff]
    %v180 = vld [vmem:[#allocation6 + $0x30] sm:$0xff]
    %v181 = vld [vmem:[#allocation6 + $0x38] sm:$0xff]
    %v182 = vld [vmem:[#allocation6 + $0x40] sm:$0xff]
    %v183 = vld [vmem:[#allocation6 + $0x48] sm:$0xff]
    %v184 = vld [vmem:[#allocation6 + $0x50] sm:$0xff]
    %v185 = vld [vmem:[#allocation6 + $0x58] sm:$0xff]
    %v186 = vld [vmem:[#allocation6 + $0x60] sm:$0xff]
    %v187 = vld [vmem:[#allocation6 + $0x68] sm:$0xff]
    %v188 = vld [vmem:[#allocation6 + $0x70] sm:$0xff]
    %v189 = vld [vmem:[#allocation6 + $0x78] sm:$0xff]
    %v190 = vld [vmem:[#allocation6 + $0x80] sm:$0xff]
    %v191 = vld [vmem:[#allocation6 + $0x88] sm:$0xff]
    %v192 = vld [vmem:[#allocation6 + $0x90] sm:$0xff]
    %v193 = vld [vmem:[#allocation6 + $0x98] sm:$0xff]
    %v194 = vld [vmem:[#allocation6 + $0xa0] sm:$0xff]
    %v195 = vld [vmem:[#allocation6 + $0xa8] sm:$0xff]
    %v196 = vld [vmem:[#allocation6 + $0xb0] sm:$0xff]
    %v197 = vld [vmem:[#allocation6 + $0xb8] sm:$0xff]
    %v198 = vld [vmem:[#allocation6 + $0xc0] sm:$0xff]
    %v199 = vld [vmem:[#allocation6 + $0xc8] sm:$0xff]
    %v200 = vld [vmem:[#allocation6 + $0xd0] sm:$0xff]
    %v201 = vld [vmem:[#allocation6 + $0xd8] sm:$0xff]
    %v202 = vld [vmem:[#allocation6 + $0xe0] sm:$0xff]
    %v203 = vld [vmem:[#allocation6 + $0xe8] sm:$0xff]
    %v204 = vld [vmem:[#allocation6 + $0xf0] sm:$0xff]
    %v205 = vld [vmem:[#allocation6 + $0xf8] sm:$0xff]
    %v206 = vld [vmem:[%s4] sm:$0x3]
    %v208 = vlaneseq
    %v209 = vshrl.u32 %v208, 7
    %v210 = vsub.s32 0, %v209
    %v211 = vrot.slane %v206, %v210
    %v212 = vlaneseq
    %v213 = vshrl.u32 %v212, 7
    %v214 = vsub.s32 1, %v213
    %v215 = vrot.slane %v206, %v214
    %v250 = vunpack.c.l.b16 %v174
    %v251 = vunpack.c.h.b16 %v174
    %v252 = vunpack.c.l.b16 %v175
    %v253 = vunpack.c.h.b16 %v175
    %v254 = vunpack.c.l.b16 %v176
    %v255 = vunpack.c.h.b16 %v176
    %v256 = vunpack.c.l.b16 %v177
    %v257 = vunpack.c.h.b16 %v177
    %v258 = vunpack.c.l.b16 %v178
    %v259 = vunpack.c.h.b16 %v178
    %v260 = vunpack.c.l.b16 %v179
    %v261 = vunpack.c.h.b16 %v179
    %v262 = vunpack.c.l.b16 %v180
    %v263 = vunpack.c.h.b16 %v180
    %v264 = vunpack.c.l.b16 %v181
    %v265 = vunpack.c.h.b16 %v181
    %v266 = vunpack.c.l.b16 %v182
    %v267 = vunpack.c.h.b16 %v182
    %v268 = vunpack.c.l.b16 %v183
    %v269 = vunpack.c.h.b16 %v183
    %v270 = vunpack.c.l.b16 %v184
    %v271 = vunpack.c.h.b16 %v184
    %v272 = vunpack.c.l.b16 %v185
    %v273 = vunpack.c.h.b16 %v185
    %v274 = vunpack.c.l.b16 %v186
    %v275 = vunpack.c.h.b16 %v186
    %v276 = vunpack.c.l.b16 %v187
    %v277 = vunpack.c.h.b16 %v187
    %v278 = vunpack.c.l.b16 %v188
    %v279 = vunpack.c.h.b16 %v188
    %v280 = vunpack.c.l.b16 %v189
    %v281 = vunpack.c.h.b16 %v189
    %v282 = vunpack.c.l.b16 %v190
    %v283 = vunpack.c.h.b16 %v190
    %v284 = vunpack.c.l.b16 %v191
    %v285 = vunpack.c.h.b16 %v191
    %v286 = vunpack.c.l.b16 %v192
    %v287 = vunpack.c.h.b16 %v192
    %v288 = vunpack.c.l.b16 %v193
    %v289 = vunpack.c.h.b16 %v193
    %v290 = vunpack.c.l.b16 %v194
    %v291 = vunpack.c.h.b16 %v194
    %v292 = vunpack.c.l.b16 %v195
    %v293 = vunpack.c.h.b16 %v195
    %v294 = vunpack.c.l.b16 %v196
    %v295 = vunpack.c.h.b16 %v196
    %v296 = vunpack.c.l.b16 %v197
    %v297 = vunpack.c.h.b16 %v197
    %v298 = vunpack.c.l.b16 %v198
    %v299 = vunpack.c.h.b16 %v198
    %v300 = vunpack.c.l.b16 %v199
    %v301 = vunpack.c.h.b16 %v199
    %v302 = vunpack.c.l.b16 %v200
    %v303 = vunpack.c.h.b16 %v200
    %v304 = vunpack.c.l.b16 %v201
    %v305 = vunpack.c.h.b16 %v201
    %v306 = vunpack.c.l.b16 %v202
    %v307 = vunpack.c.h.b16 %v202
    %v308 = vunpack.c.l.b16 %v203
    %v309 = vunpack.c.h.b16 %v203
    %v310 = vunpack.c.l.b16 %v204
    %v311 = vunpack.c.h.b16 %v204
    %v312 = vunpack.c.l.b16 %v205
    %v313 = vunpack.c.h.b16 %v205
    %v314 = vpack.c.b16 %v252, %v250
    %v315 = vpack.c.b16 %v253, %v251
    %v316 = vpack.c.b16 %v256, %v254
    %v317 = vpack.c.b16 %v257, %v255
    %v318 = vpack.c.b16 %v260, %v258
    %v319 = vpack.c.b16 %v261, %v259
    %v320 = vpack.c.b16 %v264, %v262
    %v321 = vpack.c.b16 %v265, %v263
    %v322 = vpack.c.b16 %v268, %v266
    %v323 = vpack.c.b16 %v269, %v267
    %v324 = vpack.c.b16 %v272, %v270
    %v325 = vpack.c.b16 %v273, %v271
    %v326 = vpack.c.b16 %v276, %v274
    %v327 = vpack.c.b16 %v277, %v275
    %v328 = vpack.c.b16 %v280, %v278
    %v329 = vpack.c.b16 %v281, %v279
    %v330 = vpack.c.b16 %v284, %v282
    %v331 = vpack.c.b16 %v285, %v283
    %v332 = vpack.c.b16 %v288, %v286
    %v333 = vpack.c.b16 %v289, %v287
    %v334 = vpack.c.b16 %v292, %v290
    %v335 = vpack.c.b16 %v293, %v291
    %v336 = vpack.c.b16 %v296, %v294
    %v337 = vpack.c.b16 %v297, %v295
    %v338 = vpack.c.b16 %v300, %v298
    %v339 = vpack.c.b16 %v301, %v299
    %v340 = vpack.c.b16 %v304, %v302
    %v341 = vpack.c.b16 %v305, %v303
    %v342 = vpack.c.b16 %v308, %v306
    %v343 = vpack.c.b16 %v309, %v307
    %v344 = vpack.c.b16 %v312, %v310
    %v345 = vpack.c.b16 %v313, %v311
    %378 = vmatprep.subr.bf16.mxu0 %v315
    %379 = vmatpush1.bf16.msra.mxu0 %v314
    %380 = vmatprep.subr.bf16.mxu0 %v317
    %381 = vmatpush1.bf16.msra.mxu0 %v316
    %382 = vmatprep.subr.bf16.mxu0 %v319
    %383 = vmatpush1.bf16.msra.mxu0 %v318
    %384 = vmatprep.subr.bf16.mxu0 %v321
    %385 = vmatpush1.bf16.msra.mxu0 %v320
    %386 = vmatprep.subr.bf16.mxu0 %v323
    %387 = vmatpush1.bf16.msra.mxu0 %v322
    %388 = vmatprep.subr.bf16.mxu0 %v325
    %389 = vmatpush1.bf16.msra.mxu0 %v324
    %390 = vmatprep.subr.bf16.mxu0 %v327
    %391 = vmatpush1.bf16.msra.mxu0 %v326
    %392 = vmatprep.subr.bf16.mxu0 %v329
    %393 = vmatpush1.bf16.msra.mxu0 %v328
    %394 = vmatprep.subr.bf16.mxu0 %v331
    %395 = vmatpush1.bf16.msra.mxu0 %v330
    %396 = vmatprep.subr.bf16.mxu0 %v333
    %397 = vmatpush1.bf16.msra.mxu0 %v332
    %398 = vmatprep.subr.bf16.mxu0 %v335
    %399 = vmatpush1.bf16.msra.mxu0 %v334
    %400 = vmatprep.subr.bf16.mxu0 %v337
    %401 = vmatpush1.bf16.msra.mxu0 %v336
    %402 = vmatprep.subr.bf16.mxu0 %v339
    %403 = vmatpush1.bf16.msra.mxu0 %v338
    %404 = vmatprep.subr.bf16.mxu0 %v341
    %405 = vmatpush1.bf16.msra.mxu0 %v340
    %406 = vmatprep.subr.bf16.mxu0 %v343
    %407 = vmatpush1.bf16.msra.mxu0 %v342
    %408 = vmatprep.subr.bf16.mxu0 %v345
    %409 = vmatpush1.bf16.msra.mxu0 %v344
    %410 = vmatprep.mubr.bf16.mxu0 %v173
    %411 = vmatmul.mubr.bf16.gmra.mrb[0].mxu0 %v172
    %v412 = vpop.f32.mrb[0].mxu0
    %v413 = vadd.f32 %v211, %v412
    %v414 = vpop.f32.mrb[0].mxu0
    %v415 = vadd.f32 %v215, %v414
    %v416 = vpop.f32.mrb[0].mxu0
    %v417 = vadd.f32 %v211, %v416
    %v418 = vpop.f32.mrb[0].mxu0
    %v419 = vadd.f32 %v215, %v418
    %420 = vdwg.mxu0
    %v421 = vtanh.pop %v413
    %v422 = vtanh.pop %v415
    %v423 = vtanh.pop %v417
    %v424 = vtanh.pop %v419
    %v425 = vpack.c.bf16 %v423, %v421
    %v426 = vpack.c.bf16 %v424, %v422
    %v427 = vld [vmem:[#allocation7] sm:$0xf]
    %v428 = vld [vmem:[#allocation7 + $0x4] sm:$0xf]
    %v429 = vld [vmem:[#allocation7 + $0x8] sm:$0xf]
    %v430 = vld [vmem:[#allocation7 + $0xc] sm:$0xf]
    %v431 = vld [vmem:[#allocation7 + $0x10] sm:$0xf]
    %v432 = vld [vmem:[#allocation7 + $0x14] sm:$0xf]
    %v433 = vld [vmem:[#allocation7 + $0x18] sm:$0xf]
    %v434 = vld [vmem:[#allocation7 + $0x1c] sm:$0xf]
    %v435 = vld [vmem:[#allocation7 + $0x20] sm:$0xf]
    %v436 = vld [vmem:[#allocation7 + $0x24] sm:$0xf]
    %v437 = vld [vmem:[#allocation7 + $0x28] sm:$0xf]
    %v438 = vld [vmem:[#allocation7 + $0x2c] sm:$0xf]
    %v439 = vld [vmem:[#allocation7 + $0x30] sm:$0xf]
    %v440 = vld [vmem:[#allocation7 + $0x34] sm:$0xf]
    %v441 = vld [vmem:[#allocation7 + $0x38] sm:$0xf]
    %v442 = vld [vmem:[#allocation7 + $0x3c] sm:$0xf]
    %v443 = vld [vmem:[#allocation7 + $0x40] sm:$0xf]
    %v444 = vld [vmem:[#allocation7 + $0x44] sm:$0xf]
    %v445 = vld [vmem:[#allocation7 + $0x48] sm:$0xf]
    %v446 = vld [vmem:[#allocation7 + $0x4c] sm:$0xf]
    %v447 = vld [vmem:[#allocation7 + $0x50] sm:$0xf]
    %v448 = vld [vmem:[#allocation7 + $0x54] sm:$0xf]
    %v449 = vld [vmem:[#allocation7 + $0x58] sm:$0xf]
    %v450 = vld [vmem:[#allocation7 + $0x5c] sm:$0xf]
    %v451 = vld [vmem:[#allocation7 + $0x60] sm:$0xf]
    %v452 = vld [vmem:[#allocation7 + $0x64] sm:$0xf]
    %v453 = vld [vmem:[#allocation7 + $0x68] sm:$0xf]
    %v454 = vld [vmem:[#allocation7 + $0x6c] sm:$0xf]
    %v455 = vld [vmem:[#allocation7 + $0x70] sm:$0xf]
    %v456 = vld [vmem:[#allocation7 + $0x74] sm:$0xf]
    %v457 = vld [vmem:[#allocation7 + $0x78] sm:$0xf]
    %v458 = vld [vmem:[#allocation7 + $0x7c] sm:$0xf]
    %v459 = vld [vmem:[%s6] sm:$0x1]
    %v461 = vlaneseq
    %v462 = vshrl.u32 %v461, 7
    %v463 = vsub.s32 0, %v462
    %v464 = vrot.slane %v459, %v463
    %v498 = vunpack.c.l.b16 %v427
    %v499 = vunpack.c.l.b16 %v428
    %v500 = vunpack.c.l.b16 %v429
    %v501 = vunpack.c.l.b16 %v430
    %v502 = vunpack.c.l.b16 %v431
    %v503 = vunpack.c.l.b16 %v432
    %v504 = vunpack.c.l.b16 %v433
    %v505 = vunpack.c.l.b16 %v434
    %v506 = vunpack.c.l.b16 %v435
    %v507 = vunpack.c.l.b16 %v436
    %v508 = vunpack.c.l.b16 %v437
    %v509 = vunpack.c.l.b16 %v438
    %v510 = vunpack.c.l.b16 %v439
    %v511 = vunpack.c.l.b16 %v440
    %v512 = vunpack.c.l.b16 %v441
    %v513 = vunpack.c.l.b16 %v442
    %v514 = vunpack.c.l.b16 %v443
    %v515 = vunpack.c.l.b16 %v444
    %v516 = vunpack.c.l.b16 %v445
    %v517 = vunpack.c.l.b16 %v446
    %v518 = vunpack.c.l.b16 %v447
    %v519 = vunpack.c.l.b16 %v448
    %v520 = vunpack.c.l.b16 %v449
    %v521 = vunpack.c.l.b16 %v450
    %v522 = vunpack.c.l.b16 %v451
    %v523 = vunpack.c.l.b16 %v452
    %v524 = vunpack.c.l.b16 %v453
    %v525 = vunpack.c.l.b16 %v454
    %v526 = vunpack.c.l.b16 %v455
    %v527 = vunpack.c.l.b16 %v456
    %v528 = vunpack.c.l.b16 %v457
    %v529 = vunpack.c.l.b16 %v458
    %v530 = vpack.c.b16 %v499, %v498
    %v531 = vpack.c.b16 %v501, %v500
    %v532 = vpack.c.b16 %v503, %v502
    %v533 = vpack.c.b16 %v505, %v504
    %v534 = vpack.c.b16 %v507, %v506
    %v535 = vpack.c.b16 %v509, %v508
    %v536 = vpack.c.b16 %v511, %v510
    %v537 = vpack.c.b16 %v513, %v512
    %v538 = vpack.c.b16 %v515, %v514
    %v539 = vpack.c.b16 %v517, %v516
    %v540 = vpack.c.b16 %v519, %v518
    %v541 = vpack.c.b16 %v521, %v520
    %v542 = vpack.c.b16 %v523, %v522
    %v543 = vpack.c.b16 %v525, %v524
    %v544 = vpack.c.b16 %v527, %v526
    %v545 = vpack.c.b16 %v529, %v528
    %562 = vmatprep.subr.bf16.mxu0 0
    %563 = vmatpush1.bf16.msra.mxu0 %v530
    %564 = vmatprep.subr.bf16.mxu0 0
    %565 = vmatpush1.bf16.msra.mxu0 %v531
    %566 = vmatprep.subr.bf16.mxu0 0
    %567 = vmatpush1.bf16.msra.mxu0 %v532
    %568 = vmatprep.subr.bf16.mxu0 0
    %569 = vmatpush1.bf16.msra.mxu0 %v533
    %570 = vmatprep.subr.bf16.mxu0 0
    %571 = vmatpush1.bf16.msra.mxu0 %v534
    %572 = vmatprep.subr.bf16.mxu0 0
    %573 = vmatpush1.bf16.msra.mxu0 %v535
    %574 = vmatprep.subr.bf16.mxu0 0
    %575 = vmatpush1.bf16.msra.mxu0 %v536
    %576 = vmatprep.subr.bf16.mxu0 0
    %577 = vmatpush1.bf16.msra.mxu0 %v537
    %578 = vmatprep.subr.bf16.mxu0 0
    %579 = vmatpush1.bf16.msra.mxu0 %v538
    %580 = vmatprep.subr.bf16.mxu0 0
    %581 = vmatpush1.bf16.msra.mxu0 %v539
    %582 = vmatprep.subr.bf16.mxu0 0
    %583 = vmatpush1.bf16.msra.mxu0 %v540
    %584 = vmatprep.subr.bf16.mxu0 0
    %585 = vmatpush1.bf16.msra.mxu0 %v541
    %586 = vmatprep.subr.bf16.mxu0 0
    %587 = vmatpush1.bf16.msra.mxu0 %v542
    %588 = vmatprep.subr.bf16.mxu0 0
    %589 = vmatpush1.bf16.msra.mxu0 %v543
    %590 = vmatprep.subr.bf16.mxu0 0
    %591 = vmatpush1.bf16.msra.mxu0 %v544
    %592 = vmatprep.subr.bf16.mxu0 0
    %593 = vmatpush1.bf16.msra.mxu0 %v545
    %594 = vmatprep.mubr.bf16.mxu0 %v426
    %595 = vmatmul.mubr.bf16.gmra.mrb[0].mxu0 %v425
    %v596 = vpop.f32.mrb[0].mxu0
    %v597 = vadd.f32 %v464, %v596
    %v598 = vpop.f32.mrb[0].mxu0
    %v599 = vpop.f32.mrb[0].mxu0
    %v600 = vadd.f32 %v464, %v599
    %v601 = vpop.f32.mrb[0].mxu0
    %602 = vdwg.mxu0
    %v603 = vxor.u32 %v597, 2147483648
    %v604 = vxor.u32 %v600, 2147483648
    %v605 = vmul.f32 %v603, 1.442695
    %v606 = vpow.pop %v605
    %v607 = vmul.f32 %v604, 1.442695
    %v608 = vpow.pop %v607
    %v609 = vadd.f32 %v606, 1.0
    %v610 = vadd.f32 %v608, 1.0
    %v611 = vrcp.pop %v609
    %v612 = vmul.f32 1.0, %v611
    %v613 = vrcp.pop %v610
    %v614 = vmul.f32 1.0, %v613
    %vm615 = vcmask 31744
    %616 = vst.msk [vmem:[%s7] sm:$0xff] %vm615, %v612
    %617 = vst.msk [vmem:[%s7 + $0x8] sm:$0xff] %vm615, %v614
    // Predicated region
    $region46: #{tpu_custom_call.1} parent=1 // pred_check
      _
    $region47: #{tpu_custom_call.1} parent=1 // pred_check_branch
      %619 = sbr.rel (0) target = $region49
    $region48: #{tpu_custom_call.1} parent=1 // pred_region
      _
    $region49: #{tpu_custom_call.1} parent=1 // pred_fallthru
      _
    // Predicated region
    $region50: #{tpu_custom_call.1} parent=1 // pred_check
      _
    $region51: #{tpu_custom_call.1} parent=1 // pred_check_branch
      %621 = sbr.rel (0) target = $region53
    $region52: #{tpu_custom_call.1} parent=1 // pred_region
      _
    $region53: #{tpu_custom_call.1} parent=1 // pred_fallthru
      _
    %622 = vsyncpa [#allocation3], 1
    %623 = vsyncpa [#allocation5], 1
    %624 = vsyncpa [#allocation8], 1

</llo_original>
